<compile_context>
chip_gen: v5e
topology: v5e:2x2
jax: 0.10.0
libtpu: 0.0.40
codegen_flags: <defaults>
</compile_context>

<pallas_src>
import jax
import jax.numpy as jnp
from jax.experimental import pallas as pl
from jax.experimental.pallas import tpu as pltpu


def _rup(x, m):
    return ((x + m - 1) // m) * m


# ----------------------------------------------------------------------------
# Kernel
# ----------------------------------------------------------------------------
def _make_critic_kernel(n_mxu):
    """Fused MLP kernel.

    Ref order (inputs):
      obs, (w0, b0), ..., (w_{n_mxu-1}, b_{n_mxu-1}), w_penult_row, scalars
    where
      * w_i are bf16 (K_i, Npad_i), b_i are f32 (1, Npad_i)   [MXU layers]
      * w_penult_row is f32 (1, h_last_pad)                   [VPU/XLU layer]
      * scalars (SMEM, f32[3]) = [b_penult, w_last, b_last]   [1x1 layer]
    Output: value block (tile_m, 1), f32.
    """

    def kernel(*refs):
        obs_ref = refs[0]
        mxu_refs = refs[1:1 + 2 * n_mxu]
        w_pen_ref = refs[1 + 2 * n_mxu]
        sc_ref = refs[2 + 2 * n_mxu]
        out_ref = refs[3 + 2 * n_mxu]

        x = obs_ref[...].astype(jnp.float32)             # (tile_m, K0)

        # Hidden layers: bf16 matmul on the MXU (f32 accumulate),
        # bias + ReLU in f32 on the VPU.
        for i in range(n_mxu):
            w = mxu_refs[2 * i][...]                      # bf16 (K, Npad)
            b = mxu_refs[2 * i + 1][...]                  # f32  (1, Npad)
            acc = jnp.dot(x.astype(jnp.bfloat16), w,
                          preferred_element_type=jnp.float32)
            x = jnp.maximum(acc + b, 0.0)

        # Penultimate Linear(h_last, 1) + ReLU:
        # VPU elementwise multiply + XLU cross-lane reduce (no padded matmul).
        w_pen = w_pen_ref[...]                            # f32 (1, h_last_pad)
        s = jnp.sum(x * w_pen, axis=-1, keepdims=True)    # (tile_m, 1)
        v = jnp.maximum(s + sc_ref[0], 0.0)

        # Final Linear(1, 1), no activation: scalar multiply-add on the VPU.
        out_ref[...] = v * sc_ref[1] + sc_ref[2]

    return kernel


# ----------------------------------------------------------------------------
# One-time parameter preparation (hoisted out of the per-call path)
# ----------------------------------------------------------------------------
def prepare_critic_params(weights, biases, *, lane=128):
    """Pad/cast Critic parameters once; reuse the result across forward calls.

    weights[i] has shape (in_i, out_i)  (transpose of PyTorch's (out, in));
    biases[i] has shape (out_i,).
    """
    num_linear = len(weights)
    assert num_linear >= 2, "construct_mlp always produces >= 2 Linear layers"
    n_mxu = num_linear - 2              # all layers except (h_last->1) and (1->1)

    obs_size = weights[0].shape[0]

    mxu_params = []
    in_dim = obs_size                    # first layer K = obs_size (unpadded)
    for i in range(n_mxu):
        w, b = weights[i], biases[i]
        k, n = w.shape
        out_pad = _rup(n, lane)
        wp = (jnp.zeros((in_dim, out_pad), jnp.float32)
              .at[:k, :n].set(w).astype(jnp.bfloat16))
        bp = jnp.zeros((1, out_pad), jnp.float32).at[0, :n].set(b)
        mxu_params += [wp, bp]
        in_dim = out_pad                 # next layer's K is the padded width

    # Penultimate Linear(h_last, 1): row-vector weight, f32 (VPU/XLU path).
    w_pen, b_pen = weights[n_mxu], biases[n_mxu]           # (h_last, 1), (1,)
    w_pen_row = (jnp.zeros((1, in_dim), jnp.float32)
                 .at[0, :w_pen.shape[0]].set(w_pen[:, 0]))

    # Final Linear(1, 1) scalars + penultimate bias -> SMEM.
    w_last, b_last = weights[n_mxu + 1], biases[n_mxu + 1]
    scalars = jnp.stack([b_pen[0], w_last[0, 0], b_last[0]]).astype(jnp.float32)

    return {
        "n_mxu": n_mxu,
        "obs_size": obs_size,
        "mxu_params": tuple(mxu_params),
        "w_pen_row": w_pen_row,
        "scalars": scalars,
    }


# ----------------------------------------------------------------------------
# Forward wrapper
# ----------------------------------------------------------------------------
def critic_forward(observation, params, *, tile_m=None):
    """Critic forward pass: value = MLP(observation), returned as (B, 1)."""
    B, obs_size = observation.shape
    assert obs_size == params["obs_size"]
    n_mxu = params["n_mxu"]
    mxu_params = params["mxu_params"]
    w_pen_row = params["w_pen_row"]
    scalars = params["scalars"]

    # Batch tiling: big tiles (<=512 rows) to amortize per-grid-step overhead,
    # but keep >= 2 grid steps when the batch allows it so the "parallel" axis
    # can be split across v7x's two TensorCores.
    Bp8 = _rup(B, 8)
    if tile_m is None:
        tile_m = min(512, Bp8)
        if Bp8 // tile_m <= 1 and Bp8 >= 16:
            tile_m = _rup(pl.cdiv(Bp8, 2), 8)
    Bp = _rup(B, tile_m)

    obs = observation.astype(jnp.float32)
    if Bp != B:                          # row padding only when needed
        obs = jnp.zeros((Bp, obs_size), jnp.float32).at[:B].set(obs)

    grid = (Bp // tile_m,)

    # Observation fed unpadded: last block dim == full array dim (legal), so
    # no 128-lane padded HBM copy and a 4x smaller obs read.
    obs_spec = pl.BlockSpec((tile_m, obs_size), lambda i: (i, 0))

    def _resident(arr):
        nd = arr.ndim
        return pl.BlockSpec(arr.shape, lambda i, _nd=nd: (0,) * _nd)

    in_specs = ([obs_spec]
                + [_resident(p) for p in mxu_params]
                + [_resident(w_pen_row),
                   pl.BlockSpec(memory_space=pltpu.MemorySpace.SMEM)])

    out_spec = pl.BlockSpec((tile_m, 1), lambda i: (i, 0))
    out_shape = jax.ShapeDtypeStruct((Bp, 1), jnp.float32)

    value = pl.pallas_call(
        _make_critic_kernel(n_mxu),
        out_shape=out_shape,
        grid_spec=pltpu.PrefetchScalarGridSpec(
            num_scalar_prefetch=0,
            grid=grid,
            in_specs=in_specs,
            out_specs=out_spec,
        ),
        compiler_params=pltpu.CompilerParams(
            dimension_semantics=("parallel",),
            vmem_limit_bytes=32 * 1024 * 1024),
    )(obs, *mxu_params, w_pen_row, scalars)

    return value[:B]


# ----------------------------------------------------------------------------
# Deterministic parameter init (shapes match construct_mlp(obs, hidden, 1))
# ----------------------------------------------------------------------------
def init_critic_params(key, observation_size, hidden_layers):
    layer_sizes = [observation_size] + hidden_layers + [1]
    # construct_mlp: Linear+ReLU for each consecutive pair, then a final
    # Linear(1, 1) with no activation.
    dims = list(zip(layer_sizes[:-1], layer_sizes[1:])) + [(1, 1)]

    weights, biases = [], []
    for (fan_in, fan_out) in dims:
        key, wk, bk = jax.random.split(key, 3)
        bound = 1.0 / jnp.sqrt(fan_in)
        # stored as (in, out) — transpose of PyTorch's (out, in)
        weights.append(
            jax.random.uniform(wk, (fan_in, fan_out), jnp.float32, -bound, bound))
        biases.append(
            jax.random.uniform(bk, (fan_out,), jnp.float32, -bound, bound))
    return weights, biases


# Pure-JAX references for the correctness check.
def critic_forward_ref(observation, weights, biases, *, emulate_bf16=True):
    x = observation.astype(jnp.float32)
    n = len(weights)
    for i, (w, b) in enumerate(zip(weights, biases)):
        if emulate_bf16 and i < n - 2:   # kernel runs hidden layers in bf16
            y = jnp.dot(x.astype(jnp.bfloat16), w.astype(jnp.bfloat16),
                        preferred_element_type=jnp.float32)
        else:
            y = x @ w                    # tail layers stay in f32 in the kernel
        x = y + b
        if i < n - 1:
            x = jnp.maximum(x, 0.0)
    return x


# TODO(synk): Critic.backward (Adam optimizer step) is training state, not part
# of the forward pass, and is intentionally not implemented in the kernel.


if __name__ == "__main__":
    observation_size = 32
    hidden_layers = [64, 64]
    batch = 16

    key = jax.random.PRNGKey(0)
    key, pkey, okey = jax.random.split(key, 3)

    weights, biases = init_critic_params(pkey, observation_size, hidden_layers)
    observation = jax.random.normal(okey, (batch, observation_size), jnp.float32)

    params = prepare_critic_params(weights, biases)   # pad/cast once, reuse
    value = critic_forward(observation, params)
    jax.block_until_ready(value)

    value_ref_bf16 = critic_forward_ref(observation, weights, biases,
                                        emulate_bf16=True)
    value_ref_f32 = critic_forward_ref(observation, weights, biases,
                                       emulate_bf16=False)

    assert value.shape == (batch, 1)
    assert jnp.allclose(value, value_ref_bf16, atol=1e-3, rtol=1e-3), (
        float(jnp.max(jnp.abs(value - value_ref_bf16))))
    assert jnp.allclose(value, value_ref_f32, atol=3e-2, rtol=3e-2), (
        float(jnp.max(jnp.abs(value - value_ref_f32))))

    print("KERNEL_OK")
</pallas_src>

<mosaic_0001>
module attributes {stable_mosaic.version = 11 : i64} {
  func.func @kernel(%arg0: i32, %arg1: memref<8x32xf32, #tpu.memory_space<vmem>>, %arg2: memref<32x128xbf16, #tpu.memory_space<vmem>>, %arg3: memref<1x128xf32, #tpu.memory_space<vmem>>, %arg4: memref<128x128xbf16, #tpu.memory_space<vmem>>, %arg5: memref<1x128xf32, #tpu.memory_space<vmem>>, %arg6: memref<1x128xf32, #tpu.memory_space<vmem>>, %arg7: memref<3xf32, #tpu.memory_space<smem>>, %arg8: memref<8x1xf32, #tpu.memory_space<vmem>>) attributes {dimension_semantics = [#tpu.dimension_semantics<parallel>], iteration_bounds = array<i64: 2>, scalar_prefetch = 0 : i64, scratch_operands = 0 : i64, tpu.core_type = #tpu.core_type<tc>, window_params = [{transform_indices = @transform_0, window_bounds = array<i64: 8, 32>}, {pipeline_mode = #tpu.pipeline_mode<synchronous>, transform_indices = @transform_1, window_bounds = array<i64: 32, 128>}, {pipeline_mode = #tpu.pipeline_mode<synchronous>, transform_indices = @transform_2, window_bounds = array<i64: 1, 128>}, {pipeline_mode = #tpu.pipeline_mode<synchronous>, transform_indices = @transform_3, window_bounds = array<i64: 128, 128>}, {pipeline_mode = #tpu.pipeline_mode<synchronous>, transform_indices = @transform_4, window_bounds = array<i64: 1, 128>}, {pipeline_mode = #tpu.pipeline_mode<synchronous>, transform_indices = @transform_5, window_bounds = array<i64: 1, 128>}, {transform_indices = @transform_6, window_bounds = array<i64: 3>}, {transform_indices = @transform_7, window_bounds = array<i64: 8, 1>}]} {
    %c0 = arith.constant 0 : index
    %c0_0 = arith.constant 0 : index
    %0 = vector.load %arg1[%c0, %c0_0] : memref<8x32xf32, #tpu.memory_space<vmem>>, vector<8x32xf32>
    %c0_1 = arith.constant 0 : index
    %c0_2 = arith.constant 0 : index
    %1 = vector.load %arg2[%c0_1, %c0_2] : memref<32x128xbf16, #tpu.memory_space<vmem>>, vector<32x128xbf16>
    %c0_3 = arith.constant 0 : index
    %c0_4 = arith.constant 0 : index
    %2 = vector.load %arg3[%c0_3, %c0_4] : memref<1x128xf32, #tpu.memory_space<vmem>>, vector<1x128xf32>
    %3 = arith.truncf %0 : vector<8x32xf32> to vector<8x32xbf16>
    %cst = arith.constant dense<0.000000e+00> : vector<8x128xf32>
    %4 = tpu.matmul %3, %1, %cst {dimension_numbers = #tpu.dot_dimension_numbers<[1], [0], [0], [1], [0, 0, 1, 1], [], []>} : vector<8x32xbf16>, vector<32x128xbf16>, vector<8x128xf32> -> vector<8x128xf32>
    %5 = vector.broadcast %2 : vector<1x128xf32> to vector<8x128xf32>
    %6 = arith.addf %4, %5 : vector<8x128xf32>
    %cst_5 = arith.constant 0.000000e+00 : f32
    %7 = vector.broadcast %cst_5 : f32 to vector<8x128xf32>
    %8 = arith.maximumf %6, %7 : vector<8x128xf32>
    %c0_6 = arith.constant 0 : index
    %c0_7 = arith.constant 0 : index
    %9 = vector.load %arg4[%c0_6, %c0_7] : memref<128x128xbf16, #tpu.memory_space<vmem>>, vector<128x128xbf16>
    %c0_8 = arith.constant 0 : index
    %c0_9 = arith.constant 0 : index
    %10 = vector.load %arg5[%c0_8, %c0_9] : memref<1x128xf32, #tpu.memory_space<vmem>>, vector<1x128xf32>
    %11 = arith.truncf %8 : vector<8x128xf32> to vector<8x128xbf16>
    %cst_10 = arith.constant dense<0.000000e+00> : vector<8x128xf32>
    %12 = tpu.matmul %11, %9, %cst_10 {dimension_numbers = #tpu.dot_dimension_numbers<[1], [0], [0], [1], [0, 0, 1, 1], [], []>} : vector<8x128xbf16>, vector<128x128xbf16>, vector<8x128xf32> -> vector<8x128xf32>
    %13 = vector.broadcast %10 : vector<1x128xf32> to vector<8x128xf32>
    %14 = arith.addf %12, %13 : vector<8x128xf32>
    %cst_11 = arith.constant 0.000000e+00 : f32
    %15 = vector.broadcast %cst_11 : f32 to vector<8x128xf32>
    %16 = arith.maximumf %14, %15 : vector<8x128xf32>
    %c0_12 = arith.constant 0 : index
    %c0_13 = arith.constant 0 : index
    %17 = vector.load %arg6[%c0_12, %c0_13] : memref<1x128xf32, #tpu.memory_space<vmem>>, vector<1x128xf32>
    %18 = vector.broadcast %17 : vector<1x128xf32> to vector<8x128xf32>
    %19 = arith.mulf %16, %18 : vector<8x128xf32>
    %cst_14 = arith.constant dense<0.000000e+00> : vector<8xf32>
    %20 = vector.multi_reduction <add>, %19, %cst_14 [1] : vector<8x128xf32> to vector<8xf32>
    %21 = vector.shape_cast %20 : vector<8xf32> to vector<8x1xf32>
    %c0_15 = arith.constant 0 : index
    %22 = memref.load %arg7[%c0_15] : memref<3xf32, #tpu.memory_space<smem>>
    %23 = vector.broadcast %22 : f32 to vector<8x1xf32>
    %24 = arith.addf %21, %23 : vector<8x1xf32>
    %cst_16 = arith.constant 0.000000e+00 : f32
    %25 = vector.broadcast %cst_16 : f32 to vector<8x1xf32>
    %26 = arith.maximumf %24, %25 : vector<8x1xf32>
    %c1 = arith.constant 1 : index
    %27 = memref.load %arg7[%c1] : memref<3xf32, #tpu.memory_space<smem>>
    %28 = vector.broadcast %27 : f32 to vector<8x1xf32>
    %29 = arith.mulf %26, %28 : vector<8x1xf32>
    %c2 = arith.constant 2 : index
    %30 = memref.load %arg7[%c2] : memref<3xf32, #tpu.memory_space<smem>>
    %31 = vector.broadcast %30 : f32 to vector<8x1xf32>
    %32 = arith.addf %29, %31 : vector<8x1xf32>
    %c0_17 = arith.constant 0 : index
    %c0_18 = arith.constant 0 : index
    %33 = vector.load %arg8[%c0_17, %c0_18] : memref<8x1xf32, #tpu.memory_space<vmem>>, vector<8x1xf32>
    tpu.vector_store %arg8[%c0_17, %c0_18], %32 {strides = array<i32>} : memref<8x1xf32, #tpu.memory_space<vmem>>, vector<8x1xf32>,
    return
  }
  func.func @transform_0(%arg0: i32) -> (i32, i32) {
    %c0_i32 = arith.constant 0 : i32
    %c0_i32_0 = arith.constant 0 : i32
    return %arg0, %c0_i32 : i32, i32
  }
  func.func @transform_1(%arg0: i32) -> (i32, i32) {
    %c0_i32 = arith.constant 0 : i32
    %c0_i32_0 = arith.constant 0 : i32
    %c0_i32_1 = arith.constant 0 : i32
    return %c0_i32, %c0_i32_0 : i32, i32
  }
  func.func @transform_2(%arg0: i32) -> (i32, i32) {
    %c0_i32 = arith.constant 0 : i32
    %c0_i32_0 = arith.constant 0 : i32
    %c0_i32_1 = arith.constant 0 : i32
    return %c0_i32, %c0_i32_0 : i32, i32
  }
  func.func @transform_3(%arg0: i32) -> (i32, i32) {
    %c0_i32 = arith.constant 0 : i32
    %c0_i32_0 = arith.constant 0 : i32
    %c0_i32_1 = arith.constant 0 : i32
    return %c0_i32, %c0_i32_0 : i32, i32
  }
  func.func @transform_4(%arg0: i32) -> (i32, i32) {
    %c0_i32 = arith.constant 0 : i32
    %c0_i32_0 = arith.constant 0 : i32
    %c0_i32_1 = arith.constant 0 : i32
    return %c0_i32, %c0_i32_0 : i32, i32
  }
  func.func @transform_5(%arg0: i32) -> (i32, i32) {
    %c0_i32 = arith.constant 0 : i32
    %c0_i32_0 = arith.constant 0 : i32
    %c0_i32_1 = arith.constant 0 : i32
    return %c0_i32, %c0_i32_0 : i32, i32
  }
  func.func @transform_6(%arg0: i32) -> i32 {
    %c0_i32 = arith.constant 0 : i32
    %c0_i32_0 = arith.constant 0 : i32
    return %c0_i32 : i32
  }
  func.func @transform_7(%arg0: i32) -> (i32, i32) {
    %c0_i32 = arith.constant 0 : i32
    %c0_i32_0 = arith.constant 0 : i32
    return %arg0, %c0_i32 : i32, i32
  }
}

</mosaic_0001>

<llo_original>
// kernel: tpu_custom_call.1
$region0: #{tpu_custom_call.1}
  #allocation0 [shape = 'u32[]', space=smem, size = 0x4, offset = 0x4, fixed_abs, tag = 'smem constant byte address 0x4 - core index']
  #allocation1 [shape = 'u32[72,128]{1,0:T(1,128)}', space=vmem, size = 0x9000, scoped, tag = 'internal scratch']
  %s0 = inlined_call_operand.hbm [shape: f32[16,32], index: 0, kind: input, shape index: {}]
  %s1 = inlined_call_operand.hbm [shape: bf16[32,128], index: 1, kind: input, shape index: {}]
  %s2 = inlined_call_operand.vmem [shape: f32[1,128], index: 2, kind: input, shape index: {}]
  %s3 = inlined_call_operand.hbm [shape: bf16[128,128], index: 3, kind: input, shape index: {}]
  %s4 = inlined_call_operand.vmem [shape: f32[1,128], index: 4, kind: input, shape index: {}]
  %s5 = inlined_call_operand.vmem [shape: f32[1,128], index: 5, kind: input, shape index: {}]
  %s6 = inlined_call_operand.vmem [shape: f32[3], index: 6, kind: input, shape index: {}]
  %s7 = inlined_call_operand.vmem [shape: f32[16,1], index: 7, kind: output, shape index: {}]
  %s8 = sld [smem:[#allocation0]]
  $region77: #{tpu_custom_call.1} parent=0
    _
  %s10 = ssub.s32 1, %s8
  %s11 = scalar_select 0, %s10, %s8
  $region1: #{tpu_custom_call.1} parent=0
    #allocation2 [shape = 'u8[8192]{0}', space=vmem, size = 0x2000, scoped, tag = 'input window, operand 0']
    #allocation3 [shape = 's32[2]{0}', space=sflag, size = 0x8, scoped, tag = 'scoped memory for tpu_custom_call.1']
    #allocation4 [shape = 's32[2]{0}', space=sflag, size = 0x8, scoped, tag = 'scoped memory for tpu_custom_call.1']
    #allocation5 [shape = 'u8[8192]{0}', space=vmem, size = 0x2000, scoped, tag = 'input window, operand 1, single buffered']
    #allocation6 [shape = 's32[1]{0}', space=sflag, size = 0x4, scoped, tag = 'scoped memory for tpu_custom_call.1']
    #allocation7 [shape = 'u8[32768]{0}', space=vmem, size = 0x8000, scoped, tag = 'input window, operand 3, single buffered']
    #allocation8 [shape = 'u8[512]{0}', space=smem, size = 0x200, scoped, tag = 'input window, operand 6, single buffered']
    %12 = vsyncpa [#allocation3], 0
    %s13 = scalar_lea.sflag [#allocation3], 1
    %14 = vsyncpa %s13, 0
    %15 = vsyncpa [#allocation6], 0
    %16 = vsyncpa [#allocation4], 0
    loop: start=0, step=1, limit=4
    $region2: #{tpu_custom_call.1} parent=1 // loop_pre_header
      _
    $region3: #{tpu_custom_call.1} parent=1 // loop_header
      %s18 = sphi 0, %s22
      %p19 = scmp.ge.s32.totalorder %s18, 4
      %s28 = sphi 0, %s30
      %s31 = sphi 0, %s28
      %s32 = sphi 0, %s31
      %s48 = sphi 0, %s32
      %s52 = sphi 0, %s52
      %s54 = sphi 0, %s52
      %s55 = sphi 0, %s54
      %s69 = sphi 0, %s55
      %s73 = sphi 0, %s73
      %s75 = sphi 0, %s73
      %s76 = sphi 0, %s75
      %s90 = sphi 0, %s76
      %s94 = sphi 0, %s94
      %s96 = sphi 0, %s94
      %s97 = sphi 0, %s96
      %s111 = sphi 0, %s97
      %s115 = sphi 0, %s115
      %s117 = sphi 0, %s115
      %s118 = sphi 0, %s117
      %s132 = sphi 0, %s118
      %s136 = sphi 0, %s136
      %s138 = sphi 0, %s136
      %s139 = sphi 0, %s138
      %s153 = sphi 0, %s139
      %s157 = sphi 0, %s157
      %s159 = sphi 0, %s157
      %s160 = sphi 0, %s159
      %s174 = sphi 0, %s160
      %s180 = sphi 0, %s182
      %s183 = sphi 0, %s180
      %s184 = sphi 0, %s183
      %s200 = sphi 0, %s184
    $region4: #{tpu_custom_call.1} parent=1 // loop_header_branch
      %21 = sbr.rel (%p19) target = $region8
    $region5: #{tpu_custom_call.1} parent=1 // loop_body
      %s23 = ssub.s32 %s18, 1
      %s24 = ssub.s32 %s18, 2
      %s25 = sadd.s32 %s18, 1
      %s26 = ssub.s32 %s18, %s25
      %p27 = scmp.eq.s32.totalorder %s26, 0
      %s29 = sadd.s32 %s28, 1
      %s30 = scalar_select %p27, %s28, %s29
      %p33 = pneg %p27
      %p34 = scmp.eq.s32.totalorder %s18, 1
      %p35 = por %p33, %p34
      %p36 = scmp.ne.s32.totalorder %s28, %s31
      %p37 = scmp.eq.s32.totalorder %s18, 0
      %p38 = por %p36, %p37
      %p39 = scmp.ne.s32.totalorder %s28, %s31
      %p40 = scmp.eq.s32.totalorder %s23, 1
      %p41 = por %p39, %p40
      %p42 = scmp.ne.s32.totalorder %s31, %s32
      %p43 = scmp.eq.s32.totalorder %s23, 0
      %p44 = por %p42, %p43
      %p45 = scmp.ne.s32.totalorder %s31, %s32
      %p46 = scmp.eq.s32.totalorder %s24, 1
      %p47 = por %p45, %p46
      %p49 = scmp.ne.s32.totalorder %s32, %s48
      %p50 = scmp.eq.s32.totalorder %s24, 0
      %p51 = por %p49, %p50
      %s53 = sadd.s32 %s52, 1
      %p56 = scmp.eq.s32.totalorder %s18, 1
      %p57 = scmp.ne.s32.totalorder %s52, %s54
      %p58 = scmp.eq.s32.totalorder %s18, 0
      %p59 = por %p57, %p58
      %p60 = scmp.ne.s32.totalorder %s52, %s54
      %p61 = scmp.eq.s32.totalorder %s23, 1
      %p62 = por %p60, %p61
      %p63 = scmp.ne.s32.totalorder %s54, %s55
      %p64 = scmp.eq.s32.totalorder %s23, 0
      %p65 = por %p63, %p64
      %p66 = scmp.ne.s32.totalorder %s54, %s55
      %p67 = scmp.eq.s32.totalorder %s24, 1
      %p68 = por %p66, %p67
      %p70 = scmp.ne.s32.totalorder %s55, %s69
      %p71 = scmp.eq.s32.totalorder %s24, 0
      %p72 = por %p70, %p71
      %s74 = sadd.s32 %s73, 1
      %p77 = scmp.eq.s32.totalorder %s18, 1
      %p78 = scmp.ne.s32.totalorder %s73, %s75
      %p79 = scmp.eq.s32.totalorder %s18, 0
      %p80 = por %p78, %p79
      %p81 = scmp.ne.s32.totalorder %s73, %s75
      %p82 = scmp.eq.s32.totalorder %s23, 1
      %p83 = por %p81, %p82
      %p84 = scmp.ne.s32.totalorder %s75, %s76
      %p85 = scmp.eq.s32.totalorder %s23, 0
      %p86 = por %p84, %p85
      %p87 = scmp.ne.s32.totalorder %s75, %s76
      %p88 = scmp.eq.s32.totalorder %s24, 1
      %p89 = por %p87, %p88
      %p91 = scmp.ne.s32.totalorder %s76, %s90
      %p92 = scmp.eq.s32.totalorder %s24, 0
      %p93 = por %p91, %p92
      %s95 = sadd.s32 %s94, 1
      %p98 = scmp.eq.s32.totalorder %s18, 1
      %p99 = scmp.ne.s32.totalorder %s94, %s96
      %p100 = scmp.eq.s32.totalorder %s18, 0
      %p101 = por %p99, %p100
      %p102 = scmp.ne.s32.totalorder %s94, %s96
      %p103 = scmp.eq.s32.totalorder %s23, 1
      %p104 = por %p102, %p103
      %p105 = scmp.ne.s32.totalorder %s96, %s97
      %p106 = scmp.eq.s32.totalorder %s23, 0
      %p107 = por %p105, %p106
      %p108 = scmp.ne.s32.totalorder %s96, %s97
      %p109 = scmp.eq.s32.totalorder %s24, 1
      %p110 = por %p108, %p109
      %p112 = scmp.ne.s32.totalorder %s97, %s111
      %p113 = scmp.eq.s32.totalorder %s24, 0
      %p114 = por %p112, %p113
      %s116 = sadd.s32 %s115, 1
      %p119 = scmp.eq.s32.totalorder %s18, 1
      %p120 = scmp.ne.s32.totalorder %s115, %s117
      %p121 = scmp.eq.s32.totalorder %s18, 0
      %p122 = por %p120, %p121
      %p123 = scmp.ne.s32.totalorder %s115, %s117
      %p124 = scmp.eq.s32.totalorder %s23, 1
      %p125 = por %p123, %p124
      %p126 = scmp.ne.s32.totalorder %s117, %s118
      %p127 = scmp.eq.s32.totalorder %s23, 0
      %p128 = por %p126, %p127
      %p129 = scmp.ne.s32.totalorder %s117, %s118
      %p130 = scmp.eq.s32.totalorder %s24, 1
      %p131 = por %p129, %p130
      %p133 = scmp.ne.s32.totalorder %s118, %s132
      %p134 = scmp.eq.s32.totalorder %s24, 0
      %p135 = por %p133, %p134
      %s137 = sadd.s32 %s136, 1
      %p140 = scmp.eq.s32.totalorder %s18, 1
      %p141 = scmp.ne.s32.totalorder %s136, %s138
      %p142 = scmp.eq.s32.totalorder %s18, 0
      %p143 = por %p141, %p142
      %p144 = scmp.ne.s32.totalorder %s136, %s138
      %p145 = scmp.eq.s32.totalorder %s23, 1
      %p146 = por %p144, %p145
      %p147 = scmp.ne.s32.totalorder %s138, %s139
      %p148 = scmp.eq.s32.totalorder %s23, 0
      %p149 = por %p147, %p148
      %p150 = scmp.ne.s32.totalorder %s138, %s139
      %p151 = scmp.eq.s32.totalorder %s24, 1
      %p152 = por %p150, %p151
      %p154 = scmp.ne.s32.totalorder %s139, %s153
      %p155 = scmp.eq.s32.totalorder %s24, 0
      %p156 = por %p154, %p155
      %s158 = sadd.s32 %s157, 1
      %p161 = scmp.eq.s32.totalorder %s18, 1
      %p162 = scmp.ne.s32.totalorder %s157, %s159
      %p163 = scmp.eq.s32.totalorder %s18, 0
      %p164 = por %p162, %p163
      %p165 = scmp.ne.s32.totalorder %s157, %s159
      %p166 = scmp.eq.s32.totalorder %s23, 1
      %p167 = por %p165, %p166
      %p168 = scmp.ne.s32.totalorder %s159, %s160
      %p169 = scmp.eq.s32.totalorder %s23, 0
      %p170 = por %p168, %p169
      %p171 = scmp.ne.s32.totalorder %s159, %s160
      %p172 = scmp.eq.s32.totalorder %s24, 1
      %p173 = por %p171, %p172
      %p175 = scmp.ne.s32.totalorder %s160, %s174
      %p176 = scmp.eq.s32.totalorder %s24, 0
      %p177 = por %p175, %p176
      %s178 = ssub.s32 %s18, %s25
      %p179 = scmp.eq.s32.totalorder %s178, 0
      %s181 = sadd.s32 %s180, 1
      %s182 = scalar_select %p179, %s180, %s181
      %p185 = pneg %p179
      %p186 = scmp.eq.s32.totalorder %s18, 1
      %p187 = por %p185, %p186
      %p188 = scmp.ne.s32.totalorder %s180, %s183
      %p189 = scmp.eq.s32.totalorder %s18, 0
      %p190 = por %p188, %p189
      %p191 = scmp.ne.s32.totalorder %s180, %s183
      %p192 = scmp.eq.s32.totalorder %s23, 1
      %p193 = por %p191, %p192
      %p194 = scmp.ne.s32.totalorder %s183, %s184
      %p195 = scmp.eq.s32.totalorder %s23, 0
      %p196 = por %p194, %p195
      %p197 = scmp.ne.s32.totalorder %s183, %s184
      %p198 = scmp.eq.s32.totalorder %s24, 1
      %p199 = por %p197, %p198
      %p201 = scmp.ne.s32.totalorder %s184, %s200
      %p202 = scmp.eq.s32.totalorder %s24, 0
      %p203 = por %p201, %p202
      %p204 = scmp.le.s32.totalorder 1, %s18
      %p205 = scmp.lt.s32.totalorder %s18, 3
      %p206 = pnand %p204, %p205
      %p207 = pneg %p206
      // Predicated region
      $region9: #{tpu_custom_call.1} parent=5 // pred_check
        _
      $region10: #{tpu_custom_call.1} parent=5 // pred_check_branch
        %209 = sbr.rel (%p206) target = $region12
      $region11: #{tpu_custom_call.1} parent=5 // pred_region
        %s210 = ssub.s32 %s18, 1
        // Predicated region
        $region13: #{tpu_custom_call.1} parent=11 // pred_check
          %p211 = pneg %p65
        $region14: #{tpu_custom_call.1} parent=11 // pred_check_branch
          %213 = sbr.rel (%p211) target = $region16
        $region15: #{tpu_custom_call.1} parent=11 // pred_region
          %215 = vsyncadd [#allocation6], 0
          %s216 = sshll.u32 %s1, 4
          %s217 = int_to_ptr.hbm [resolvable:$true] %s216
          %s218 = sshll.u32 [#allocation5], 4
          %s219 = int_to_ptr.vmem [resolvable:$true] %s218
          %224 = dma.hbm_to_vmem [thread:$0]  %s217, 256, %s219, [#allocation6], 64, 64, 4
        $region16: #{tpu_custom_call.1} parent=11 // pred_fallthru
          _
        // Predicated region
        $region17: #{tpu_custom_call.1} parent=11 // pred_check
          %p225 = pneg %p86
        $region18: #{tpu_custom_call.1} parent=11 // pred_check_branch
          %227 = sbr.rel (%p225) target = $region20
        $region19: #{tpu_custom_call.1} parent=11 // pred_region
          _
        $region20: #{tpu_custom_call.1} parent=11 // pred_fallthru
          _
        // Predicated region
        $region21: #{tpu_custom_call.1} parent=11 // pred_check
          %p228 = pneg %p107
        $region22: #{tpu_custom_call.1} parent=11 // pred_check_branch
          %230 = sbr.rel (%p228) target = $region24
        $region23: #{tpu_custom_call.1} parent=11 // pred_region
          %232 = vsyncadd [#allocation6], 0
          %s233 = sshll.u32 %s3, 4
          %s234 = int_to_ptr.hbm [resolvable:$true] %s233
          %s235 = sshll.u32 [#allocation7], 4
          %s236 = int_to_ptr.vmem [resolvable:$true] %s235
          %241 = dma.hbm_to_vmem [thread:$0]  %s234, 1024, %s236, [#allocation6], 64, 64, 4
        $region24: #{tpu_custom_call.1} parent=11 // pred_fallthru
          _
        // Predicated region
        $region25: #{tpu_custom_call.1} parent=11 // pred_check
          %p242 = pneg %p128
        $region26: #{tpu_custom_call.1} parent=11 // pred_check_branch
          %244 = sbr.rel (%p242) target = $region28
        $region27: #{tpu_custom_call.1} parent=11 // pred_region
          _
        $region28: #{tpu_custom_call.1} parent=11 // pred_fallthru
          _
        // Predicated region
        $region29: #{tpu_custom_call.1} parent=11 // pred_check
          %p245 = pneg %p149
        $region30: #{tpu_custom_call.1} parent=11 // pred_check_branch
          %247 = sbr.rel (%p245) target = $region32
        $region31: #{tpu_custom_call.1} parent=11 // pred_region
          _
        $region32: #{tpu_custom_call.1} parent=11 // pred_fallthru
          _
        // Predicated region
        $region33: #{tpu_custom_call.1} parent=11 // pred_check
          %p248 = pneg %p170
        $region34: #{tpu_custom_call.1} parent=11 // pred_check_branch
          %250 = sbr.rel (%p248) target = $region36
        $region35: #{tpu_custom_call.1} parent=11 // pred_region
          %252 = vsyncadd [#allocation4], 0
          %s254 = sshll.u32 %s6, 4
          %s255 = int_to_ptr.vmem [resolvable:$true] %s254
          %257 = dma.vmem_to_smem %s255, 16, [#allocation8], [#allocation4]
        $region36: #{tpu_custom_call.1} parent=11 // pred_fallthru
          _
      $region12: #{tpu_custom_call.1} parent=5 // pred_fallthru
        _
      %p258 = scmp.lt.s32.totalorder %s18, 2
      // Predicated region
      $region37: #{tpu_custom_call.1} parent=5 // pred_check
        %p259 = pneg %p258
      $region38: #{tpu_custom_call.1} parent=5 // pred_check_branch
        %261 = sbr.rel (%p259) target = $region40
      $region39: #{tpu_custom_call.1} parent=5 // pred_region
        // Predicated region
        $region41: #{tpu_custom_call.1} parent=39 // pred_check
          %p262 = pneg %p38
        $region42: #{tpu_custom_call.1} parent=39 // pred_check_branch
          %264 = sbr.rel (%p262) target = $region44
        $region43: #{tpu_custom_call.1} parent=39 // pred_region
          %s265 = sand.u32 %s28, 1
          %s266 = scalar_lea.sflag [#allocation3], %s265
          %s267 = sand.u32 %s28, 1
          %s268 = smul.addr %s267, 8
          %s269 = scalar_lea.vmem [#allocation2], %s268
          %271 = vsyncadd %s266, 0
          %s272 = smul.addr %s18, 8
          %s273 = scalar_lea.hbm %s0, %s272
          %s275 = sshll.u32 %s273, 4
          %s276 = int_to_ptr.hbm [resolvable:$true] %s275
          %s277 = sshll.u32 %s269, 4
          %s278 = int_to_ptr.vmem [resolvable:$true] %s277
          %280 = dma.hbm_to_vmem [thread:$0]  %s276, 128, %s278, %s266
        $region44: #{tpu_custom_call.1} parent=39 // pred_fallthru
          _
      $region40: #{tpu_custom_call.1} parent=5 // pred_fallthru
        _
      %p281 = scmp.le.s32.totalorder 1, %s18
      %p282 = scmp.lt.s32.totalorder %s18, 3
      %p283 = pnand %p281, %p282
      %p284 = pneg %p283
      // Predicated region
      $region45: #{tpu_custom_call.1} parent=5 // pred_check
        _
      $region46: #{tpu_custom_call.1} parent=5 // pred_check_branch
        %286 = sbr.rel (%p283) target = $region48
      $region47: #{tpu_custom_call.1} parent=5 // pred_region
        %s287 = ssub.s32 %s18, 1
        %s288 = sand.u32 %s31, 1
        %s289 = scalar_lea.sflag [#allocation3], %s288
        %s290 = sand.u32 %s31, 1
        %s291 = smul.addr %s290, 8
        %s292 = scalar_lea.vmem [#allocation2], %s291
        // Predicated region
        $region49: #{tpu_custom_call.1} parent=47 // pred_check
          %p293 = pneg %p44
        $region50: #{tpu_custom_call.1} parent=47 // pred_check_branch
          %295 = sbr.rel (%p293) target = $region52
        $region51: #{tpu_custom_call.1} parent=47 // pred_region
          %297 = dma.done %s289, 128
        $region52: #{tpu_custom_call.1} parent=47 // pred_fallthru
          _
        // Predicated region
        $region53: #{tpu_custom_call.1} parent=47 // pred_check
          %p298 = pneg %p65
        $region54: #{tpu_custom_call.1} parent=47 // pred_check_branch
          %300 = sbr.rel (%p298) target = $region56
        $region55: #{tpu_custom_call.1} parent=47 // pred_region
          %302 = dma.done [#allocation6], 256
        $region56: #{tpu_custom_call.1} parent=47 // pred_fallthru
          _
        // Predicated region
        $region57: #{tpu_custom_call.1} parent=47 // pred_check
          %p303 = pneg %p107
        $region58: #{tpu_custom_call.1} parent=47 // pred_check_branch
          %305 = sbr.rel (%p303) target = $region60
        $region59: #{tpu_custom_call.1} parent=47 // pred_region
          %307 = dma.done [#allocation6], 1024
        $region60: #{tpu_custom_call.1} parent=47 // pred_fallthru
          _
        // Predicated region
        $region61: #{tpu_custom_call.1} parent=47 // pred_check
          %p308 = pneg %p170
        $region62: #{tpu_custom_call.1} parent=47 // pred_check_branch
          %310 = sbr.rel (%p308) target = $region64
        $region63: #{tpu_custom_call.1} parent=47 // pred_region
          %312 = dma.done [#allocation4], 16
        $region64: #{tpu_custom_call.1} parent=47 // pred_fallthru
          _
        %313 = sfence
        %s314 = sand.u32 %s31, 1
        %s315 = scalar_lea.sflag [#allocation3], %s314
        %s316 = sand.u32 %s31, 1
        %s317 = smul.addr %s316, 8
        %s318 = scalar_lea.vmem [#allocation2], %s317
        %p319 = pneg %p44
        %p320 = pneg %p41
        %p321 = pneg %p65
        %p322 = pneg %p62
        %p323 = pneg %p86
        %p324 = pneg %p83
        %p325 = pneg %p107
        %p326 = pneg %p104
        %p327 = pneg %p128
        %p328 = pneg %p125
        %p329 = pneg %p149
        %p330 = pneg %p146
        %p331 = pneg %p170
        %p332 = pneg %p167
        %p333 = pneg %p196
        %p334 = pneg %p193
        %p335 = scmp.lt.s32.totalorder %s23, 1
        %s336 = scalar_select %p335, %s23, 1
        %s337 = smul.addr %s336, 8
        %s338 = scalar_lea.vmem %s7, %s337
        %p339 = scmp.lt.s32.totalorder %s23, 1
        %s340 = scalar_select %p339, %s23, 1
        %s341 = smul.addr %s340, 8
        %s342 = scalar_lea.vmem %s7, %s341
        %v344 = vld [vmem:[%s292] sm:$0xff]
        %v345 = vld [vmem:[#allocation5] sm:$0xf]
        %v346 = vld [vmem:[#allocation5 + $0x4] sm:$0xf]
        %v347 = vld [vmem:[#allocation5 + $0x8] sm:$0xf]
        %v348 = vld [vmem:[#allocation5 + $0xc] sm:$0xf]
        %v349 = vld [vmem:[%s2] sm:$0x1]
        %v350 = vpack.c.bf16 %v344, %v344
        %v352 = vperm.slane %v349, 0
        %v358 = vunpack.c.l.b16 %v345
        %v359 = vunpack.c.l.b16 %v346
        %v360 = vunpack.c.l.b16 %v347
        %v361 = vunpack.c.l.b16 %v348
        %v362 = vpack.c.b16 %v359, %v358
        %v363 = vpack.c.b16 %v361, %v360
        %vm366 = vcmask 261120
        %v368 = vsel %vm366, %v350, 0
        %370 = vmatpush.bf16.msra.mxu0 0
        %371 = vmatpush.bf16.msra.mxu0 0
        %372 = vmatpush.bf16.msra.mxu0 0
        %373 = vmatpush.bf16.msra.mxu0 0
        %374 = vmatpush.bf16.msra.mxu0 0
        %375 = vmatpush.bf16.msra.mxu0 0
        %376 = vmatpush.bf16.msra.mxu0 %v363
        %377 = vmatpush.bf16.msra.mxu0 %v362
        %378 = vmatmul.bf16.gmra.mxu0 %v368
        %v379 = vpop.f32.mrf.mxu0
        %v380 = vadd.f32 %v352, %v379
        %v381 = vpop.f32.mrf.mxu0
        %382 = vdwg.mxu0
        %v383 = vmax.f32 %v380, 0.0
        %v384 = vld [vmem:[#allocation7] sm:$0xf]
        %v385 = vld [vmem:[#allocation7 + $0x4] sm:$0xf]
        %v386 = vld [vmem:[#allocation7 + $0x8] sm:$0xf]
        %v387 = vld [vmem:[#allocation7 + $0xc] sm:$0xf]
        %v388 = vld [vmem:[#allocation7 + $0x10] sm:$0xf]
        %v389 = vld [vmem:[#allocation7 + $0x14] sm:$0xf]
        %v390 = vld [vmem:[#allocation7 + $0x18] sm:$0xf]
        %v391 = vld [vmem:[#allocation7 + $0x1c] sm:$0xf]
        %v392 = vld [vmem:[#allocation7 + $0x20] sm:$0xf]
        %v393 = vld [vmem:[#allocation7 + $0x24] sm:$0xf]
        %v394 = vld [vmem:[#allocation7 + $0x28] sm:$0xf]
        %v395 = vld [vmem:[#allocation7 + $0x2c] sm:$0xf]
        %v396 = vld [vmem:[#allocation7 + $0x30] sm:$0xf]
        %v397 = vld [vmem:[#allocation7 + $0x34] sm:$0xf]
        %v398 = vld [vmem:[#allocation7 + $0x38] sm:$0xf]
        %v399 = vld [vmem:[#allocation7 + $0x3c] sm:$0xf]
        %v400 = vld [vmem:[%s4] sm:$0x1]
        %v401 = vpack.c.bf16 %v383, %v383
        %v403 = vperm.slane %v400, 0
        %v421 = vunpack.c.l.b16 %v384
        %v422 = vunpack.c.l.b16 %v385
        %v423 = vunpack.c.l.b16 %v386
        %v424 = vunpack.c.l.b16 %v387
        %v425 = vunpack.c.l.b16 %v388
        %v426 = vunpack.c.l.b16 %v389
        %v427 = vunpack.c.l.b16 %v390
        %v428 = vunpack.c.l.b16 %v391
        %v429 = vunpack.c.l.b16 %v392
        %v430 = vunpack.c.l.b16 %v393
        %v431 = vunpack.c.l.b16 %v394
        %v432 = vunpack.c.l.b16 %v395
        %v433 = vunpack.c.l.b16 %v396
        %v434 = vunpack.c.l.b16 %v397
        %v435 = vunpack.c.l.b16 %v398
        %v436 = vunpack.c.l.b16 %v399
        %v437 = vpack.c.b16 %v422, %v421
        %v438 = vpack.c.b16 %v424, %v423
        %v439 = vpack.c.b16 %v426, %v425
        %v440 = vpack.c.b16 %v428, %v427
        %v441 = vpack.c.b16 %v430, %v429
        %v442 = vpack.c.b16 %v432, %v431
        %v443 = vpack.c.b16 %v434, %v433
        %v444 = vpack.c.b16 %v436, %v435
        %453 = vmatpush.bf16.msra.mxu0 %v444
        %454 = vmatpush.bf16.msra.mxu0 %v443
        %455 = vmatpush.bf16.msra.mxu0 %v442
        %456 = vmatpush.bf16.msra.mxu0 %v441
        %457 = vmatpush.bf16.msra.mxu0 %v440
        %458 = vmatpush.bf16.msra.mxu0 %v439
        %459 = vmatpush.bf16.msra.mxu0 %v438
        %460 = vmatpush.bf16.msra.mxu0 %v437
        %461 = vmatmul.bf16.gmra.mxu0 %v401
        %v462 = vpop.f32.mrf.mxu0
        %v463 = vadd.f32 %v403, %v462
        %v464 = vpop.f32.mrf.mxu0
        %465 = vdwg.mxu0
        %v466 = vmax.f32 %v463, 0.0
        %v467 = vld [vmem:[%s5] sm:$0x1]
        %v469 = vperm.slane %v467, 0
        %v471 = vmul.f32 %v466, %v469
        %472 = vadd.xlane.f32.xlu0 %v471
        %v473 = vpop.xlane.xlu0 %472
        %s474 = sld [smem:[#allocation8]]
        %v475 = vstv %s474
        %v476 = vadd.f32 %v473, %v475
        %v477 = vmax.f32 %v476, 0.0
        %s478 = sld [smem:[#allocation8 + $0x1]]
        %v479 = vstv %s478
        %v480 = vmul.f32 %v477, %v479
        %s481 = sld [smem:[#allocation8 + $0x2]]
        %v482 = vstv %s481
        %v483 = vadd.f32 %v480, %v482
        %vm484 = vcmask 7168
        %485 = vst.msk [vmem:[%s342] sm:$0xff] %vm484, %v483
        %p486 = scmp.lt.s32.totalorder %s23, 1
        %s487 = scalar_select %p486, %s23, 1
        %s488 = smul.addr %s487, 8
        %s489 = scalar_lea.vmem %s7, %s488
        // Predicated region
        $region65: #{tpu_custom_call.1} parent=47 // pred_check
          %p490 = pneg %p193
        $region66: #{tpu_custom_call.1} parent=47 // pred_check_branch
          %492 = sbr.rel (%p490) target = $region68
        $region67: #{tpu_custom_call.1} parent=47 // pred_region
          _
        $region68: #{tpu_custom_call.1} parent=47 // pred_fallthru
          _
      $region48: #{tpu_custom_call.1} parent=5 // pred_fallthru
        _
      %p493 = scmp.le.s32.totalorder 2, %s18
      // Predicated region
      $region69: #{tpu_custom_call.1} parent=5 // pred_check
        %p494 = pneg %p493
      $region70: #{tpu_custom_call.1} parent=5 // pred_check_branch
        %496 = sbr.rel (%p494) target = $region72
      $region71: #{tpu_custom_call.1} parent=5 // pred_region
        %s497 = ssub.s32 %s18, 2
        // Predicated region
        $region73: #{tpu_custom_call.1} parent=71 // pred_check
          %p498 = pneg %p199
        $region74: #{tpu_custom_call.1} parent=71 // pred_check_branch
          %500 = sbr.rel (%p498) target = $region76
        $region75: #{tpu_custom_call.1} parent=71 // pred_region
          %p501 = scmp.lt.s32.totalorder %s24, 1
          %s502 = scalar_select %p501, %s24, 1
          %s503 = smul.addr %s502, 8
          %s504 = scalar_lea.vmem %s7, %s503
        $region76: #{tpu_custom_call.1} parent=71 // pred_fallthru
          _
      $region72: #{tpu_custom_call.1} parent=5 // pred_fallthru
        _
    $region6: #{tpu_custom_call.1} parent=1 // loop_footer
      %s22 = sadd.s32 1, %s18
    $region7: #{tpu_custom_call.1} parent=1 // loop_footer_branch
      %17 = sbr.rel target = $region3
    $region8: #{tpu_custom_call.1} parent=1 // loop_exit
      _
    %505 = vsyncpa [#allocation3], 1
    %s506 = scalar_lea.sflag [#allocation3], 1
    %507 = vsyncpa %s506, 1
    %508 = vsyncpa [#allocation6], 1
    %509 = vsyncpa [#allocation4], 1
    %s510 = scalar_lea.sflag [#allocation4], 1
    %511 = vsyncpa %s510, 1

</llo_original>
